<compile_context>
chip_gen: v6e
topology: v6e:2x2x1
jax: 0.10.0
libtpu: 0.0.40
codegen_flags: <defaults>
</compile_context>

<pallas_src>
import jax
import jax.numpy as jnp
from jax.experimental import pallas as pl
from jax.experimental.pallas import tpu as pltpu

_LANES = 128          # lane width of a vreg
_CHUNK_ROWS = 64      # 64 rows x 128 lanes = 8192 elements per grid step


def _planning_loss_kernel(sdc_ref, gt_ref, mask_ref, out_ref, num_acc, den_acc):
    # sdc_ref / gt_ref : (2, chunk, 128) VMEM, native dtype (x / y coord planes)
    # mask_ref         : (chunk, 128)    VMEM, int8 (0/1 validity mask)
    # out_ref          : (1, 1)          SMEM, f32 scalar loss
    # num_acc/den_acc  : (1, 128)        VMEM f32 scratch, persist across grid
    step = pl.program_id(0)

    @pl.when(step == 0)
    def _init():
        num_acc[...] = jnp.zeros_like(num_acc)
        den_acc[...] = jnp.zeros_like(den_acc)

    s = sdc_ref[...].astype(jnp.float32)            # (2, chunk, 128)
    g = gt_ref[...].astype(jnp.float32)
    d = s - g
    sq = d * d
    dist = jnp.sqrt(sq[0] + sq[1])                  # (chunk, 128) per-step L2
    m = mask_ref[...].astype(jnp.float32)           # (chunk, 128)

    # Sublane partial reductions; full reduce only once, in the finalize step.
    num_acc[...] += jnp.sum(dist * m, axis=0, keepdims=True)   # (1, 128)
    den_acc[...] += jnp.sum(m, axis=0, keepdims=True)          # (1, 128)

    @pl.when(step == pl.num_programs(0) - 1)
    def _finalize():
        num = jnp.sum(num_acc[...])
        den = jnp.sum(den_acc[...])
        out_ref[0, 0] = num / (den + 1e-5)


def planning_loss(sdc_traj, gt_sdc_fut_traj, mask):
    """Pallas implementation of PlanningLoss.forward (loss_type='L2').

    sdc_traj / gt_sdc_fut_traj : (B, T, C) float, C >= 2 (only x, y are used)
    mask                       : (B, T) 0/1 validity mask
    returns                    : scalar float32
    """
    B, T = mask.shape
    n = B * T

    rows = pl.cdiv(n, _LANES)
    if rows <= _CHUNK_ROWS:
        # Single full-array block (grid of 1); full-sublane slab.
        rows = max(8, ((rows + 7) // 8) * 8)
        chunk = rows
    else:
        # Chunked reduction grid (8192 elements per step).
        rows = ((rows + _CHUNK_ROWS - 1) // _CHUNK_ROWS) * _CHUNK_ROWS
        chunk = _CHUNK_ROWS
    n_pad = rows * _LANES
    pad = n_pad - n
    num_steps = rows // chunk

    def prep_traj(traj):
        # One fused copy per tensor: slice (x, y), fold B*T onto sublanes, pad.
        xy = traj[..., :2].reshape(n, 2).T          # (2, n)
        if pad:
            xy = jnp.pad(xy, ((0, 0), (0, pad)))    # pad region -> dist == 0
        return xy.reshape(2, rows, _LANES)          # native dtype

    sdc2 = prep_traj(sdc_traj)                      # (2, rows, 128)
    gt2 = prep_traj(gt_sdc_fut_traj)                # (2, rows, 128)
    m = mask.reshape(n).astype(jnp.int8)            # 0/1 mask -> 4x less DMA
    if pad:
        m = jnp.pad(m, (0, pad))                    # pad region -> mask == 0
    m = m.reshape(rows, _LANES)

    out = pl.pallas_call(
        _planning_loss_kernel,
        out_shape=jax.ShapeDtypeStruct((1, 1), jnp.float32),
        grid=(num_steps,),
        in_specs=[
            pl.BlockSpec((2, chunk, _LANES), lambda i: (0, i, 0)),
            pl.BlockSpec((2, chunk, _LANES), lambda i: (0, i, 0)),
            pl.BlockSpec((chunk, _LANES), lambda i: (i, 0)),
        ],
        out_specs=pl.BlockSpec(memory_space=pltpu.MemorySpace.SMEM),
        scratch_shapes=[
            pltpu.VMEM((1, _LANES), jnp.float32),   # numerator partial sums
            pltpu.VMEM((1, _LANES), jnp.float32),   # denominator partial sums
        ],
        compiler_params=pltpu.CompilerParams(dimension_semantics=("arbitrary",)),
    )(sdc2, gt2, m)
    return out[0, 0]


def _planning_loss_ref(sdc_traj, gt_sdc_fut_traj, mask):
    err = sdc_traj[..., :2].astype(jnp.float32) - gt_sdc_fut_traj[..., :2].astype(jnp.float32)
    err = jnp.sum(err ** 2, axis=-1)
    err = jnp.sqrt(err)
    m = mask.astype(jnp.float32)
    return jnp.sum(err * m) / (jnp.sum(m) + 1e-5)


if __name__ == "__main__":
    # Typical planning-loss shapes: batch=2, planning horizon T=6, (x, y).
    k1, k2, k3 = jax.random.split(jax.random.PRNGKey(0), 3)
    B, T, C = 2, 6, 2
    sdc_traj = jax.random.normal(k1, (B, T, C), dtype=jnp.float32)
    gt_traj = jax.random.normal(k2, (B, T, C), dtype=jnp.float32)
    mask = (jax.random.uniform(k3, (B, T)) > 0.3).astype(jnp.float32)

    loss = jax.block_until_ready(planning_loss(sdc_traj, gt_traj, mask))
    ref = _planning_loss_ref(sdc_traj, gt_traj, mask)
    assert jnp.allclose(loss, ref, rtol=1e-5, atol=1e-5), (loss, ref)

    # Larger case exercising the chunked ("arbitrary") reduction grid and C > 2.
    k4, k5, k6 = jax.random.split(jax.random.PRNGKey(1), 3)
    B2, T2, C2 = 4, 2100, 4
    sdc_l = jax.random.normal(k4, (B2, T2, C2), dtype=jnp.float32)
    gt_l = jax.random.normal(k5, (B2, T2, C2), dtype=jnp.float32)
    mask_l = (jax.random.uniform(k6, (B2, T2)) > 0.5).astype(jnp.float32)

    loss_l = jax.block_until_ready(planning_loss(sdc_l, gt_l, mask_l))
    ref_l = _planning_loss_ref(sdc_l, gt_l, mask_l)
    assert jnp.allclose(loss_l, ref_l, rtol=1e-4, atol=1e-4), (loss_l, ref_l)

    print("KERNEL_OK")
</pallas_src>

<mosaic_0001>
module attributes {stable_mosaic.version = 11 : i64} {
  func.func @_planning_loss_kernel(%arg0: i32, %arg1: memref<2x8x128xf32, #tpu.memory_space<vmem>>, %arg2: memref<2x8x128xf32, #tpu.memory_space<vmem>>, %arg3: memref<8x128xi8, #tpu.memory_space<vmem>>, %arg4: memref<1x1xf32, #tpu.memory_space<smem>>, %arg5: memref<1x128xf32, #tpu.memory_space<vmem>>, %arg6: memref<1x128xf32, #tpu.memory_space<vmem>>) attributes {dimension_semantics = [#tpu.dimension_semantics<arbitrary>], iteration_bounds = array<i64: 1>, scalar_prefetch = 0 : i64, scratch_operands = 2 : i64, tpu.core_type = #tpu.core_type<tc>, window_params = [{transform_indices = @transform_0, window_bounds = array<i64: 2, 8, 128>}, {transform_indices = @transform_1, window_bounds = array<i64: 2, 8, 128>}, {transform_indices = @transform_2, window_bounds = array<i64: 8, 128>}, {transform_indices = @transform_3, window_bounds = array<i64: 1, 1>}]} {
    %c0_i32 = arith.constant 0 : i32
    %0 = arith.cmpi eq, %arg0, %c0_i32 : i32
    %1 = arith.extui %0 : i1 to i32
    %c0_i32_0 = arith.constant 0 : i32
    %2 = arith.cmpi ne, %1, %c0_i32_0 : i32
    scf.if %2 {
      %cst_19 = arith.constant 0.000000e+00 : f32
      %29 = vector.broadcast %cst_19 : f32 to vector<1x128xf32>
      %c0_20 = arith.constant 0 : index
      %c0_21 = arith.constant 0 : index
      %30 = vector.load %arg5[%c0_20, %c0_21] : memref<1x128xf32, #tpu.memory_space<vmem>>, vector<1x128xf32>
      tpu.vector_store %arg5[%c0_20, %c0_21], %29 {strides = array<i32>} : memref<1x128xf32, #tpu.memory_space<vmem>>, vector<1x128xf32>,
      %cst_22 = arith.constant 0.000000e+00 : f32
      %31 = vector.broadcast %cst_22 : f32 to vector<1x128xf32>
      %c0_23 = arith.constant 0 : index
      %c0_24 = arith.constant 0 : index
      %32 = vector.load %arg6[%c0_23, %c0_24] : memref<1x128xf32, #tpu.memory_space<vmem>>, vector<1x128xf32>
      tpu.vector_store %arg6[%c0_23, %c0_24], %31 {strides = array<i32>} : memref<1x128xf32, #tpu.memory_space<vmem>>, vector<1x128xf32>,
    } else {
    }
    %c0 = arith.constant 0 : index
    %c0_1 = arith.constant 0 : index
    %c0_2 = arith.constant 0 : index
    %3 = vector.load %arg1[%c0, %c0_1, %c0_2] : memref<2x8x128xf32, #tpu.memory_space<vmem>>, vector<2x8x128xf32>
    %c0_3 = arith.constant 0 : index
    %c0_4 = arith.constant 0 : index
    %c0_5 = arith.constant 0 : index
    %4 = vector.load %arg2[%c0_3, %c0_4, %c0_5] : memref<2x8x128xf32, #tpu.memory_space<vmem>>, vector<2x8x128xf32>
    %5 = arith.subf %3, %4 : vector<2x8x128xf32>
    %6 = arith.mulf %5, %5 : vector<2x8x128xf32>
    %7 = vector.extract_strided_slice %6 {offsets = [0, 0, 0], sizes = [1, 8, 128], strides = [1, 1, 1]} : vector<2x8x128xf32> to vector<1x8x128xf32>
    %8 = vector.shape_cast %7 : vector<1x8x128xf32> to vector<8x128xf32>
    %9 = vector.extract_strided_slice %6 {offsets = [1, 0, 0], sizes = [1, 8, 128], strides = [1, 1, 1]} : vector<2x8x128xf32> to vector<1x8x128xf32>
    %10 = vector.shape_cast %9 : vector<1x8x128xf32> to vector<8x128xf32>
    %11 = arith.addf %8, %10 : vector<8x128xf32>
    %12 = math.sqrt %11 : vector<8x128xf32>
    %c0_6 = arith.constant 0 : index
    %c0_7 = arith.constant 0 : index
    %13 = vector.load %arg3[%c0_6, %c0_7] : memref<8x128xi8, #tpu.memory_space<vmem>>, vector<8x128xi8>
    %14 = arith.sitofp %13 : vector<8x128xi8> to vector<8x128xf32>
    %c0_8 = arith.constant 0 : index
    %c0_9 = arith.constant 0 : index
    %15 = vector.load %arg5[%c0_8, %c0_9] : memref<1x128xf32, #tpu.memory_space<vmem>>, vector<1x128xf32>
    %16 = arith.mulf %12, %14 : vector<8x128xf32>
    %cst = arith.constant dense<0.000000e+00> : vector<128xf32>
    %17 = vector.multi_reduction <add>, %16, %cst [0] : vector<8x128xf32> to vector<128xf32>
    %18 = vector.shape_cast %17 : vector<128xf32> to vector<1x128xf32>
    %19 = arith.addf %15, %18 : vector<1x128xf32>
    %c0_10 = arith.constant 0 : index
    %c0_11 = arith.constant 0 : index
    %20 = vector.load %arg5[%c0_10, %c0_11] : memref<1x128xf32, #tpu.memory_space<vmem>>, vector<1x128xf32>
    tpu.vector_store %arg5[%c0_10, %c0_11], %19 {strides = array<i32>} : memref<1x128xf32, #tpu.memory_space<vmem>>, vector<1x128xf32>,
    %c0_12 = arith.constant 0 : index
    %c0_13 = arith.constant 0 : index
    %21 = vector.load %arg6[%c0_12, %c0_13] : memref<1x128xf32, #tpu.memory_space<vmem>>, vector<1x128xf32>
    %cst_14 = arith.constant dense<0.000000e+00> : vector<128xf32>
    %22 = vector.multi_reduction <add>, %14, %cst_14 [0] : vector<8x128xf32> to vector<128xf32>
    %23 = vector.shape_cast %22 : vector<128xf32> to vector<1x128xf32>
    %24 = arith.addf %21, %23 : vector<1x128xf32>
    %c0_15 = arith.constant 0 : index
    %c0_16 = arith.constant 0 : index
    %25 = vector.load %arg6[%c0_15, %c0_16] : memref<1x128xf32, #tpu.memory_space<vmem>>, vector<1x128xf32>
    tpu.vector_store %arg6[%c0_15, %c0_16], %24 {strides = array<i32>} : memref<1x128xf32, #tpu.memory_space<vmem>>, vector<1x128xf32>,
    %c0_i32_17 = arith.constant 0 : i32
    %26 = arith.cmpi eq, %arg0, %c0_i32_17 : i32
    %27 = arith.extui %26 : i1 to i32
    %c0_i32_18 = arith.constant 0 : i32
    %28 = arith.cmpi ne, %27, %c0_i32_18 : i32
    scf.if %28 {
      %c0_19 = arith.constant 0 : index
      %c0_20 = arith.constant 0 : index
      %29 = vector.load %arg5[%c0_19, %c0_20] : memref<1x128xf32, #tpu.memory_space<vmem>>, vector<1x128xf32>
      %30 = vector.shape_cast %29 : vector<1x128xf32> to vector<1x1x128xf32>
      %cst_21 = arith.constant dense<0.000000e+00> : vector<1xf32>
      %31 = vector.multi_reduction <add>, %30, %cst_21 [1, 2] : vector<1x1x128xf32> to vector<1xf32>
      %32 = vector.shape_cast %31 : vector<1xf32> to vector<1x1x1xf32>
      %33 = vector.extract %32[0, 0, 0] : f32 from vector<1x1x1xf32>
      %c0_22 = arith.constant 0 : index
      %c0_23 = arith.constant 0 : index
      %34 = vector.load %arg6[%c0_22, %c0_23] : memref<1x128xf32, #tpu.memory_space<vmem>>, vector<1x128xf32>
      %35 = vector.shape_cast %34 : vector<1x128xf32> to vector<1x1x128xf32>
      %cst_24 = arith.constant dense<0.000000e+00> : vector<1xf32>
      %36 = vector.multi_reduction <add>, %35, %cst_24 [1, 2] : vector<1x1x128xf32> to vector<1xf32>
      %37 = vector.shape_cast %36 : vector<1xf32> to vector<1x1x1xf32>
      %38 = vector.extract %37[0, 0, 0] : f32 from vector<1x1x1xf32>
      %cst_25 = arith.constant 9.99999974E-6 : f32
      %39 = arith.addf %38, %cst_25 : f32
      %40 = arith.divf %33, %39 : f32
      %c0_26 = arith.constant 0 : index
      %c0_27 = arith.constant 0 : index
      %41 = memref.load %arg4[%c0_26, %c0_27] : memref<1x1xf32, #tpu.memory_space<smem>>
      memref.store %40, %arg4[%c0_26, %c0_27] : memref<1x1xf32, #tpu.memory_space<smem>>
    } else {
    }
    return
  }
  func.func @transform_0(%arg0: i32) -> (i32, i32, i32) {
    %c0_i32 = arith.constant 0 : i32
    %c0_i32_0 = arith.constant 0 : i32
    %c0_i32_1 = arith.constant 0 : i32
    return %c0_i32, %arg0, %c0_i32_0 : i32, i32, i32
  }
  func.func @transform_1(%arg0: i32) -> (i32, i32, i32) {
    %c0_i32 = arith.constant 0 : i32
    %c0_i32_0 = arith.constant 0 : i32
    %c0_i32_1 = arith.constant 0 : i32
    return %c0_i32, %arg0, %c0_i32_0 : i32, i32, i32
  }
  func.func @transform_2(%arg0: i32) -> (i32, i32) {
    %c0_i32 = arith.constant 0 : i32
    %c0_i32_0 = arith.constant 0 : i32
    return %arg0, %c0_i32 : i32, i32
  }
  func.func @transform_3(%arg0: i32) -> (i32, i32) {
    %c0_i32 = arith.constant 0 : i32
    %c0_i32_0 = arith.constant 0 : i32
    %c0_i32_1 = arith.constant 0 : i32
    return %c0_i32, %c0_i32_0 : i32, i32
  }
}

</mosaic_0001>

<llo_original>
// kernel: tpu_custom_call.1
$region0: #{tpu_custom_call.1}
  #allocation0 [shape = 'u32[]', space=smem, size = 0x4, offset = 0x4, fixed_abs, tag = 'smem constant byte address 0x4 - core index']
  #allocation1 [shape = 'u32[144,128]{1,0:T(1,128)}', space=vmem, size = 0x12000, scoped, tag = 'internal scratch']
  #allocation2 [shape = 'f32[1,128]{1,0:T(1,128)}', space=vmem, size = 0x200, scoped, tag = 'scratch operand']
  #allocation3 [shape = 'f32[1,128]{1,0:T(1,128)}', space=vmem, size = 0x200, scoped, tag = 'scratch operand']
  %s0 = inlined_call_operand.hbm [shape: f32[2,8,128], index: 0, kind: input, shape index: {}]
  %s1 = inlined_call_operand.hbm [shape: f32[2,8,128], index: 1, kind: input, shape index: {}]
  %s2 = inlined_call_operand.vmem [shape: s8[8,128], index: 2, kind: input, shape index: {}]
  %s3 = inlined_call_operand.hbm [shape: f32[1,1], index: 3, kind: output, shape index: {}]
  %s4 = sld [smem:[#allocation0]]
  $region38: #{tpu_custom_call.1} parent=0
    _
  %s6 = ssub.s32 1, %s4
  %s7 = scalar_select 0, %s6, %s4
  $region1: #{tpu_custom_call.1} parent=0
    #allocation4 [shape = 'u8[8192]{0}', space=vmem, size = 0x2000, scoped, tag = 'input window, operand 0, single buffered']
    #allocation5 [shape = 's32[1]{0}', space=sflag, size = 0x4, scoped, tag = 'scoped memory for tpu_custom_call.1']
    #allocation6 [shape = 's32[1]{0}', space=sflag, size = 0x4, scoped, tag = 'scoped memory for tpu_custom_call.1']
    #allocation7 [shape = 'u8[8192]{0}', space=vmem, size = 0x2000, scoped, tag = 'input window, operand 1, single buffered']
    #allocation8 [shape = 's32[1]{0}', space=sflag, size = 0x4, scoped, tag = 'scoped memory for tpu_custom_call.1']
    #allocation9 [shape = 'u8[512]{0}', space=smem, size = 0x200, scoped, tag = 'output window, operand 0, single buffered']
    %8 = vsyncpa [#allocation5], 0
    %9 = vsyncpa [#allocation8], 0
    %10 = vsyncpa [#allocation6], 0
    // Predicated region
    $region2: #{tpu_custom_call.1} parent=1 // pred_check
      _
    $region3: #{tpu_custom_call.1} parent=1 // pred_check_branch
      %12 = sbr.rel (0) target = $region5
    $region4: #{tpu_custom_call.1} parent=1 // pred_region
      %s14 = ssub.s32 256, 256
      %15 = vsyncadd [#allocation5], %s14
      %s16 = sshll.u32 [#allocation4], 4
      %s17 = int_to_ptr.vmem [resolvable:$true] %s16
      %22 = dma.hbm_to_vmem [thread:$0]  %s0, 256, %s17, [#allocation5], 128, 128, 8
    $region5: #{tpu_custom_call.1} parent=1 // pred_fallthru
      _
    // Predicated region
    $region6: #{tpu_custom_call.1} parent=1 // pred_check
      _
    $region7: #{tpu_custom_call.1} parent=1 // pred_check_branch
      %24 = sbr.rel (0) target = $region9
    $region8: #{tpu_custom_call.1} parent=1 // pred_region
      %s26 = ssub.s32 256, 256
      %27 = vsyncadd [#allocation8], %s26
      %s28 = sshll.u32 [#allocation7], 4
      %s29 = int_to_ptr.vmem [resolvable:$true] %s28
      %34 = dma.hbm_to_vmem [thread:$0]  %s1, 256, %s29, [#allocation8], 128, 128, 8
    $region9: #{tpu_custom_call.1} parent=1 // pred_fallthru
      _
    // Predicated region
    $region10: #{tpu_custom_call.1} parent=1 // pred_check
      _
    $region11: #{tpu_custom_call.1} parent=1 // pred_check_branch
      %36 = sbr.rel (0) target = $region13
    $region12: #{tpu_custom_call.1} parent=1 // pred_region
      _
    $region13: #{tpu_custom_call.1} parent=1 // pred_fallthru
      _
    // Predicated region
    $region14: #{tpu_custom_call.1} parent=1 // pred_check
      _
    $region15: #{tpu_custom_call.1} parent=1 // pred_check_branch
      %38 = sbr.rel (0) target = $region17
    $region16: #{tpu_custom_call.1} parent=1 // pred_region
      %39 = dma.done [#allocation5], 256
    $region17: #{tpu_custom_call.1} parent=1 // pred_fallthru
      _
    // Predicated region
    $region18: #{tpu_custom_call.1} parent=1 // pred_check
      _
    $region19: #{tpu_custom_call.1} parent=1 // pred_check_branch
      %41 = sbr.rel (0) target = $region21
    $region20: #{tpu_custom_call.1} parent=1 // pred_region
      %42 = dma.done [#allocation8], 256
    $region21: #{tpu_custom_call.1} parent=1 // pred_fallthru
      _
    %p43 = scmp.eq.s32.totalorder 0, 0
    // Predicated region
    $region22: #{tpu_custom_call.1} parent=1 // pred_check
      %p44 = pneg %p43
    $region23: #{tpu_custom_call.1} parent=1 // pred_check_branch
      %46 = sbr.rel (%p44) target = $region25
    $region24: #{tpu_custom_call.1} parent=1 // pred_region
      %47 = vst [vmem:[#allocation2] sm:$0x1] 0.0
      %48 = vst [vmem:[#allocation3] sm:$0x1] 0.0
    $region25: #{tpu_custom_call.1} parent=1 // pred_fallthru
      _
    %v49 = vld [vmem:[#allocation4] sm:$0xff]
    %v50 = vld [vmem:[#allocation4 + $0x8] sm:$0xff]
    %v51 = vld [vmem:[#allocation7] sm:$0xff]
    %v52 = vld [vmem:[#allocation7 + $0x8] sm:$0xff]
    %v53 = vsub.f32 %v49, %v51
    %v54 = vsub.f32 %v50, %v52
    %v55 = vmul.f32 %v53, %v53
    %v56 = vmul.f32 %v54, %v54
    %v57 = vadd.f32 %v55, %v56
    %v58 = vrsqrt.pop %v57
    %v59 = vmul.f32 %v57, %v58
    %vm60 = vcmp.eq.f32.partialorder %v57, inf
    %v61 = vsel %vm60, %v57, %v59
    %vm62 = vcmp.eq.f32.partialorder %v57, 0.0
    %v63 = vand.u32 %v57, 2147483648
    %v64 = vsel %vm62, %v63, %v61
    %v65 = vld [vmem:[%s2] sm:$0x3]
    %v66 = vunpack.c.0.s8 %v65
    %v67 = vcvt.s32.f32 %v66
    %v68 = vld [vmem:[#allocation2] sm:$0x1]
    %v69 = vmul.f32 %v64, %v67
    %v70 = vrot.slane %v69, 4
    %v71 = vadd.f32 %v69, %v70
    %v72 = vrot.slane %v71, 2
    %v73 = vadd.f32 %v71, %v72
    %v74 = vrot.slane %v73, 1
    %v75 = vadd.f32 %v73, %v74
    %v76 = vadd.f32 %v68, %v75
    %77 = vst [vmem:[#allocation2] sm:$0x1] %v76
    %v78 = vld [vmem:[#allocation3] sm:$0x1]
    %v79 = vrot.slane %v67, 4
    %v80 = vadd.f32 %v67, %v79
    %v81 = vrot.slane %v80, 2
    %v82 = vadd.f32 %v80, %v81
    %v83 = vrot.slane %v82, 1
    %v84 = vadd.f32 %v82, %v83
    %v85 = vadd.f32 %v78, %v84
    %86 = vst [vmem:[#allocation3] sm:$0x1] %v85
    // Predicated region
    $region26: #{tpu_custom_call.1} parent=1 // pred_check
      %p87 = pneg %p43
    $region27: #{tpu_custom_call.1} parent=1 // pred_check_branch
      %89 = sbr.rel (%p87) target = $region29
    $region28: #{tpu_custom_call.1} parent=1 // pred_region
      %v90 = vld [vmem:[#allocation2] sm:$0x1]
      %vm91 = vcmask 1040384
      %v92 = vsel %vm91, %v90, 0.0
      %93 = vadd.xlane.f32.xlu0 %v92
      %v94 = vpop.xlane.xlu0 %93
      %v95 = vrot.slane %v94, 4
      %v96 = vadd.f32 %v94, %v95
      %v97 = vrot.slane %v96, 2
      %v98 = vadd.f32 %v96, %v97
      %v99 = vrot.slane %v98, 1
      %v100 = vadd.f32 %v98, %v99
      %s101 = vtos %v100
      %v102 = vld [vmem:[#allocation3] sm:$0x1]
      %v103 = vsel %vm91, %v102, 0.0
      %104 = vadd.xlane.f32.xlu0 %v103
      %v105 = vpop.xlane.xlu0 %104
      %v106 = vrot.slane %v105, 4
      %v107 = vadd.f32 %v105, %v106
      %v108 = vrot.slane %v107, 2
      %v109 = vadd.f32 %v107, %v108
      %v110 = vrot.slane %v109, 1
      %v111 = vadd.f32 %v109, %v110
      %s112 = vtos %v111
      %s113 = sadd.f32 %s112, 1e-05
      %v114 = vstv %s113
      %v115 = vrcp.pop %v114
      %s116 = vtos %v115
      %s117 = smul.f32 %s101, %s116
      %s118 = scalar_lea.smem [#allocation9], 0
      %119 = sst [smem:[%s118]] %s117
    $region29: #{tpu_custom_call.1} parent=1 // pred_fallthru
      _
    // Predicated region
    $region30: #{tpu_custom_call.1} parent=1 // pred_check
      _
    $region31: #{tpu_custom_call.1} parent=1 // pred_check_branch
      %121 = sbr.rel (0) target = $region33
    $region32: #{tpu_custom_call.1} parent=1 // pred_region
      %s123 = ssub.s32 16, 16
      %124 = vsyncadd [#allocation6], %s123
      %127 = dma.smem_to_hbm [#allocation9], 16, %s3, [#allocation6]
    $region33: #{tpu_custom_call.1} parent=1 // pred_fallthru
      _
    // Predicated region
    $region34: #{tpu_custom_call.1} parent=1 // pred_check
      _
    $region35: #{tpu_custom_call.1} parent=1 // pred_check_branch
      %129 = sbr.rel (0) target = $region37
    $region36: #{tpu_custom_call.1} parent=1 // pred_region
      %130 = dma.done [#allocation6], 16
    $region37: #{tpu_custom_call.1} parent=1 // pred_fallthru
      _
    %131 = sfence
    %132 = vsyncpa [#allocation5], 1
    %133 = vsyncpa [#allocation8], 1
    %134 = vsyncpa [#allocation6], 1

</llo_original>
